<compile_context>
chip_gen: v7x
topology: tpu7x:2x2x1
jax: 0.10.0
libtpu: 0.0.40
codegen_flags: <defaults>
</compile_context>

<pallas_src>
import functools

import jax
import jax.numpy as jnp
from jax.experimental import pallas as pl
from jax.experimental.pallas import tpu as pltpu

# Model hyper-parameters (from the PyTorch module)
C_IN = 7
C_OUT = 4
K = 5

# TPU-friendly padded sizes
C_IN_PAD = 8                        # pad channels 7 -> 8 (sublane friendly)
C_OUT_PAD = 8                       # pad output channels 4 -> 8
LANE = 128                          # lane width
KKC = K * K * C_IN_PAD + 1          # 200 tap rows + 1 bias row = 201
KKC_PAD = 256                       # contraction pad (VMEM-only slab)


def _round_up(x, m):
    return (x + m - 1) // m * m


def _convt_gelu_kernel(w_ref, x_ref, o_ref, slab_ref, *, wp, l_out):
    """One image per grid step.

    w_ref:    (C_OUT_PAD, KKC_PAD)    flipped weights + bias column (zero padded)
    x_ref:    (1, C_IN_PAD, L_IN)     flattened zero-padded image
    o_ref:    (1, C_OUT_PAD, L_OUT)   lane-dense output slab
    slab_ref: (KKC_PAD, L_OUT) VMEM   im2col patch slab, built in-kernel
    """
    # Build the im2col slab: 25 statically shifted lane windows of the image.
    # Tap (kh, kw) of output column j lives at input column j + kh*Wp + kw.
    for t in range(K * K):
        kh, kw = t // K, t % K
        shift = kh * wp + kw
        slab_ref[pl.ds(t * C_IN_PAD, C_IN_PAD), :] = (
            x_ref[0, :, pl.ds(shift, l_out)])

    # Tail rows: row 200 is the bias "ones" row, rows 201..KKC_PAD-1 are zero
    # (must be written: uninitialized VMEM could hold NaNs).
    row = jax.lax.broadcasted_iota(jnp.int32, (C_IN_PAD, l_out), 0)
    ones_block = jnp.where(row == 0, 1.0, 0.0).astype(slab_ref.dtype)
    zeros_block = jnp.zeros((C_IN_PAD, l_out), slab_ref.dtype)
    n_tail_blocks = (KKC_PAD - K * K * C_IN_PAD) // C_IN_PAD
    for b in range(n_tail_blocks):
        base = K * K * C_IN_PAD + b * C_IN_PAD
        slab_ref[pl.ds(base, C_IN_PAD), :] = ones_block if b == 0 else zeros_block

    # Single MXU matmul; bias already folded in via the ones row.
    v1 = jnp.dot(w_ref[...], slab_ref[...], preferred_element_type=jnp.float32)

    # Fused tanh-GELU chain (v5 = v1 + 0.044715*v1^3 folded into one expr).
    v5 = v1 * (1.0 + 0.044715 * (v1 * v1))
    v7 = jnp.tanh(v5 * 0.7978845608028654)
    o_ref[0] = (0.5 * v1 * (v7 + 1.0)).astype(o_ref.dtype)


def _build_weight_mat(weight, bias):
    """weight: (C_in, C_out, K, K), bias: (C_out,) -> (C_OUT_PAD, KKC_PAD)."""
    # ConvTranspose2d(stride=1, pad=0) == full conv with spatially flipped kernel.
    w_flip = weight[:, :, ::-1, ::-1]                       # (Cin, Cout, K, K)
    w_k = jnp.transpose(w_flip, (2, 3, 0, 1))               # (K, K, Cin, Cout)
    w_k = jnp.pad(w_k, ((0, 0), (0, 0), (0, C_IN_PAD - C_IN), (0, 0)))
    w_mat = jnp.transpose(w_k, (3, 0, 1, 2)).reshape(C_OUT, K * K * C_IN_PAD)
    w_mat = jnp.concatenate([w_mat, bias.reshape(C_OUT, 1)], axis=1)  # bias col
    w_mat = jnp.pad(w_mat, ((0, C_OUT_PAD - C_OUT), (0, KKC_PAD - KKC)))
    return w_mat


def conv_transpose_gelu(x_nchw, weight, bias):
    """x_nchw: (N, C_in, H, W) f32
    weight:   (C_in, C_out, K, K) f32 (PyTorch ConvTranspose2d layout)
    bias:     (C_out,) f32
    Returns:  (N, C_out, H+K-1, W+K-1) f32
    """
    n, c_in, h, w = x_nchw.shape
    assert c_in == C_IN, c_in
    hp, wp = h + 2 * (K - 1), w + 2 * (K - 1)     # full-conv padded input size
    ho, wo = h + K - 1, w + K - 1                 # conv-transpose output size
    l_out = _round_up(hp * wp, LANE)
    max_shift = (K - 1) * wp + (K - 1)
    l_in = l_out + _round_up(max_shift, LANE)     # margin so tap slices stay in-bounds

    # Channel pad 7 -> 8, spatial zero pad by K-1 on every side, flatten spatial.
    x_pad = jnp.pad(
        x_nchw.astype(jnp.float32),
        ((0, 0), (0, C_IN_PAD - c_in), (K - 1, K - 1), (K - 1, K - 1)))
    x_flat = x_pad.reshape(n, C_IN_PAD, hp * wp)
    x_flat = jnp.pad(x_flat, ((0, 0), (0, 0), (0, l_in - hp * wp)))

    w_mat = _build_weight_mat(weight, bias)

    kernel = functools.partial(_convt_gelu_kernel, wp=wp, l_out=l_out)
    out = pl.pallas_call(
        kernel,
        out_shape=jax.ShapeDtypeStruct((n, C_OUT_PAD, l_out), jnp.float32),
        grid=(n,),
        in_specs=[
            pl.BlockSpec((C_OUT_PAD, KKC_PAD), lambda i: (0, 0)),
            pl.BlockSpec((1, C_IN_PAD, l_in), lambda i: (i, 0, 0)),
        ],
        out_specs=pl.BlockSpec((1, C_OUT_PAD, l_out), lambda i: (i, 0, 0)),
        scratch_shapes=[pltpu.VMEM((KKC_PAD, l_out), jnp.float32)],
        compiler_params=pltpu.CompilerParams(
            dimension_semantics=("parallel",)),
    )(w_mat, x_flat)

    # Column j of the slab is padded coordinate (j // Wp, j % Wp); crop to the
    # valid (Ho, Wo) window. Channel axis is already leading -> no transpose.
    y = out[:, :C_OUT, :hp * wp].reshape(n, C_OUT, hp, wp)
    return y[:, :, :ho, :wo]


def _reference(x_nchw, weight, bias):
    """Pure-JAX reference: ConvTranspose2d(stride=1, pad=0) + the GELU chain."""
    n, c_in, h, w = x_nchw.shape
    h_out, w_out = h + K - 1, w + K - 1
    x_nhwc = jnp.transpose(x_nchw, (0, 2, 3, 1))
    x_pad = jnp.pad(x_nhwc, ((0, 0), (K - 1, K - 1), (K - 1, K - 1), (0, 0)))
    w_flip = weight[:, :, ::-1, ::-1]
    w_k = jnp.transpose(w_flip, (2, 3, 0, 1))
    acc = jnp.zeros((n, h_out, w_out, C_OUT), jnp.float32)
    for kh in range(K):
        for kw in range(K):
            acc += jnp.einsum(
                "nhwc,co->nhwo",
                x_pad[:, kh:kh + h_out, kw:kw + w_out, :],
                w_k[kh, kw],
            )
    v1 = acc + bias.reshape(1, 1, 1, C_OUT)
    v2 = v1 * 0.5
    v3 = v1 * v1 * v1
    v4 = v3 * 0.044715
    v5 = v1 + v4
    v6 = v5 * 0.7978845608028654
    v7 = jnp.tanh(v6)
    v9 = v2 * (v7 + 1.0)
    return jnp.transpose(v9, (0, 3, 1, 2))


if __name__ == "__main__":
    key = jax.random.PRNGKey(0)
    kx, kw, kb = jax.random.split(key, 3)

    # Shapes consistent with the module: ConvTranspose2d expects 7 input channels.
    # batch=2 so the parallel grid has 2 steps (both v7x TensorCores get work).
    N, H, W = 2, 2, 12
    x = jax.random.normal(kx, (N, C_IN, H, W), dtype=jnp.float32)
    fan = C_IN * K * K
    weight = jax.random.normal(kw, (C_IN, C_OUT, K, K), dtype=jnp.float32) / jnp.sqrt(fan)
    bias = jax.random.normal(kb, (C_OUT,), dtype=jnp.float32) * 0.1

    out = conv_transpose_gelu(x, weight, bias)
    out = jax.block_until_ready(out)

    ref = _reference(x, weight, bias)
    assert out.shape == (N, C_OUT, H + K - 1, W + K - 1), out.shape
    assert jnp.allclose(out, ref, rtol=1e-4, atol=1e-4), \
        float(jnp.max(jnp.abs(out - ref)))

    print("KERNEL_OK")
</pallas_src>

<mosaic_0001>
module attributes {stable_mosaic.version = 11 : i64} {
  func.func @_convt_gelu_kernel(%arg0: i32, %arg1: memref<8x256xf32, #tpu.memory_space<vmem>>, %arg2: memref<1x8x384xf32, #tpu.memory_space<vmem>>, %arg3: memref<1x8x256xf32, #tpu.memory_space<vmem>>, %arg4: memref<256x256xf32, #tpu.memory_space<vmem>>) attributes {dimension_semantics = [#tpu.dimension_semantics<parallel>], iteration_bounds = array<i64: 2>, scalar_prefetch = 0 : i64, scratch_operands = 1 : i64, tpu.core_type = #tpu.core_type<tc>, window_params = [{pipeline_mode = #tpu.pipeline_mode<synchronous>, transform_indices = @transform_0, window_bounds = array<i64: 8, 256>}, {transform_indices = @transform_1, window_bounds = array<i64: 1, 8, 384>}, {transform_indices = @transform_2, window_bounds = array<i64: 1, 8, 256>}]} {
    %c0 = arith.constant 0 : index
    %c0_0 = arith.constant 0 : index
    %c0_1 = arith.constant 0 : index
    %0 = vector.load %arg2[%c0, %c0_0, %c0_1] : memref<1x8x384xf32, #tpu.memory_space<vmem>>, vector<1x8x256xf32>
    %1 = vector.shape_cast %0 : vector<1x8x256xf32> to vector<8x256xf32>
    %c0_2 = arith.constant 0 : index
    %c0_3 = arith.constant 0 : index
    %2 = vector.load %arg4[%c0_2, %c0_3] : memref<256x256xf32, #tpu.memory_space<vmem>>, vector<8x256xf32>
    tpu.vector_store %arg4[%c0_2, %c0_3], %1 {strides = array<i32>} : memref<256x256xf32, #tpu.memory_space<vmem>>, vector<8x256xf32>,
    %c0_4 = arith.constant 0 : index
    %c0_5 = arith.constant 0 : index
    %c1 = arith.constant 1 : index
    %3 = vector.load %arg2[%c0_4, %c0_5, %c1] : memref<1x8x384xf32, #tpu.memory_space<vmem>>, vector<1x8x256xf32>
    %4 = vector.shape_cast %3 : vector<1x8x256xf32> to vector<8x256xf32>
    %c8 = arith.constant 8 : index
    %c0_6 = arith.constant 0 : index
    %5 = vector.load %arg4[%c8, %c0_6] : memref<256x256xf32, #tpu.memory_space<vmem>>, vector<8x256xf32>
    tpu.vector_store %arg4[%c8, %c0_6], %4 {strides = array<i32>} : memref<256x256xf32, #tpu.memory_space<vmem>>, vector<8x256xf32>,
    %c0_7 = arith.constant 0 : index
    %c0_8 = arith.constant 0 : index
    %c2 = arith.constant 2 : index
    %6 = vector.load %arg2[%c0_7, %c0_8, %c2] : memref<1x8x384xf32, #tpu.memory_space<vmem>>, vector<1x8x256xf32>
    %7 = vector.shape_cast %6 : vector<1x8x256xf32> to vector<8x256xf32>
    %c16 = arith.constant 16 : index
    %c0_9 = arith.constant 0 : index
    %8 = vector.load %arg4[%c16, %c0_9] : memref<256x256xf32, #tpu.memory_space<vmem>>, vector<8x256xf32>
    tpu.vector_store %arg4[%c16, %c0_9], %7 {strides = array<i32>} : memref<256x256xf32, #tpu.memory_space<vmem>>, vector<8x256xf32>,
    %c0_10 = arith.constant 0 : index
    %c0_11 = arith.constant 0 : index
    %c3 = arith.constant 3 : index
    %9 = vector.load %arg2[%c0_10, %c0_11, %c3] : memref<1x8x384xf32, #tpu.memory_space<vmem>>, vector<1x8x256xf32>
    %10 = vector.shape_cast %9 : vector<1x8x256xf32> to vector<8x256xf32>
    %c24 = arith.constant 24 : index
    %c0_12 = arith.constant 0 : index
    %11 = vector.load %arg4[%c24, %c0_12] : memref<256x256xf32, #tpu.memory_space<vmem>>, vector<8x256xf32>
    tpu.vector_store %arg4[%c24, %c0_12], %10 {strides = array<i32>} : memref<256x256xf32, #tpu.memory_space<vmem>>, vector<8x256xf32>,
    %c0_13 = arith.constant 0 : index
    %c0_14 = arith.constant 0 : index
    %c4 = arith.constant 4 : index
    %12 = vector.load %arg2[%c0_13, %c0_14, %c4] : memref<1x8x384xf32, #tpu.memory_space<vmem>>, vector<1x8x256xf32>
    %13 = vector.shape_cast %12 : vector<1x8x256xf32> to vector<8x256xf32>
    %c32 = arith.constant 32 : index
    %c0_15 = arith.constant 0 : index
    %14 = vector.load %arg4[%c32, %c0_15] : memref<256x256xf32, #tpu.memory_space<vmem>>, vector<8x256xf32>
    tpu.vector_store %arg4[%c32, %c0_15], %13 {strides = array<i32>} : memref<256x256xf32, #tpu.memory_space<vmem>>, vector<8x256xf32>,
    %c0_16 = arith.constant 0 : index
    %c0_17 = arith.constant 0 : index
    %c20 = arith.constant 20 : index
    %15 = vector.load %arg2[%c0_16, %c0_17, %c20] : memref<1x8x384xf32, #tpu.memory_space<vmem>>, vector<1x8x256xf32>
    %16 = vector.shape_cast %15 : vector<1x8x256xf32> to vector<8x256xf32>
    %c40 = arith.constant 40 : index
    %c0_18 = arith.constant 0 : index
    %17 = vector.load %arg4[%c40, %c0_18] : memref<256x256xf32, #tpu.memory_space<vmem>>, vector<8x256xf32>
    tpu.vector_store %arg4[%c40, %c0_18], %16 {strides = array<i32>} : memref<256x256xf32, #tpu.memory_space<vmem>>, vector<8x256xf32>,
    %c0_19 = arith.constant 0 : index
    %c0_20 = arith.constant 0 : index
    %c21 = arith.constant 21 : index
    %18 = vector.load %arg2[%c0_19, %c0_20, %c21] : memref<1x8x384xf32, #tpu.memory_space<vmem>>, vector<1x8x256xf32>
    %19 = vector.shape_cast %18 : vector<1x8x256xf32> to vector<8x256xf32>
    %c48 = arith.constant 48 : index
    %c0_21 = arith.constant 0 : index
    %20 = vector.load %arg4[%c48, %c0_21] : memref<256x256xf32, #tpu.memory_space<vmem>>, vector<8x256xf32>
    tpu.vector_store %arg4[%c48, %c0_21], %19 {strides = array<i32>} : memref<256x256xf32, #tpu.memory_space<vmem>>, vector<8x256xf32>,
    %c0_22 = arith.constant 0 : index
    %c0_23 = arith.constant 0 : index
    %c22 = arith.constant 22 : index
    %21 = vector.load %arg2[%c0_22, %c0_23, %c22] : memref<1x8x384xf32, #tpu.memory_space<vmem>>, vector<1x8x256xf32>
    %22 = vector.shape_cast %21 : vector<1x8x256xf32> to vector<8x256xf32>
    %c56 = arith.constant 56 : index
    %c0_24 = arith.constant 0 : index
    %23 = vector.load %arg4[%c56, %c0_24] : memref<256x256xf32, #tpu.memory_space<vmem>>, vector<8x256xf32>
    tpu.vector_store %arg4[%c56, %c0_24], %22 {strides = array<i32>} : memref<256x256xf32, #tpu.memory_space<vmem>>, vector<8x256xf32>,
    %c0_25 = arith.constant 0 : index
    %c0_26 = arith.constant 0 : index
    %c23 = arith.constant 23 : index
    %24 = vector.load %arg2[%c0_25, %c0_26, %c23] : memref<1x8x384xf32, #tpu.memory_space<vmem>>, vector<1x8x256xf32>
    %25 = vector.shape_cast %24 : vector<1x8x256xf32> to vector<8x256xf32>
    %c64 = arith.constant 64 : index
    %c0_27 = arith.constant 0 : index
    %26 = vector.load %arg4[%c64, %c0_27] : memref<256x256xf32, #tpu.memory_space<vmem>>, vector<8x256xf32>
    tpu.vector_store %arg4[%c64, %c0_27], %25 {strides = array<i32>} : memref<256x256xf32, #tpu.memory_space<vmem>>, vector<8x256xf32>,
    %c0_28 = arith.constant 0 : index
    %c0_29 = arith.constant 0 : index
    %c24_30 = arith.constant 24 : index
    %27 = vector.load %arg2[%c0_28, %c0_29, %c24_30] : memref<1x8x384xf32, #tpu.memory_space<vmem>>, vector<1x8x256xf32>
    %28 = vector.shape_cast %27 : vector<1x8x256xf32> to vector<8x256xf32>
    %c72 = arith.constant 72 : index
    %c0_31 = arith.constant 0 : index
    %29 = vector.load %arg4[%c72, %c0_31] : memref<256x256xf32, #tpu.memory_space<vmem>>, vector<8x256xf32>
    tpu.vector_store %arg4[%c72, %c0_31], %28 {strides = array<i32>} : memref<256x256xf32, #tpu.memory_space<vmem>>, vector<8x256xf32>,
    %c0_32 = arith.constant 0 : index
    %c0_33 = arith.constant 0 : index
    %c40_34 = arith.constant 40 : index
    %30 = vector.load %arg2[%c0_32, %c0_33, %c40_34] : memref<1x8x384xf32, #tpu.memory_space<vmem>>, vector<1x8x256xf32>
    %31 = vector.shape_cast %30 : vector<1x8x256xf32> to vector<8x256xf32>
    %c80 = arith.constant 80 : index
    %c0_35 = arith.constant 0 : index
    %32 = vector.load %arg4[%c80, %c0_35] : memref<256x256xf32, #tpu.memory_space<vmem>>, vector<8x256xf32>
    tpu.vector_store %arg4[%c80, %c0_35], %31 {strides = array<i32>} : memref<256x256xf32, #tpu.memory_space<vmem>>, vector<8x256xf32>,
    %c0_36 = arith.constant 0 : index
    %c0_37 = arith.constant 0 : index
    %c41 = arith.constant 41 : index
    %33 = vector.load %arg2[%c0_36, %c0_37, %c41] : memref<1x8x384xf32, #tpu.memory_space<vmem>>, vector<1x8x256xf32>
    %34 = vector.shape_cast %33 : vector<1x8x256xf32> to vector<8x256xf32>
    %c88 = arith.constant 88 : index
    %c0_38 = arith.constant 0 : index
    %35 = vector.load %arg4[%c88, %c0_38] : memref<256x256xf32, #tpu.memory_space<vmem>>, vector<8x256xf32>
    tpu.vector_store %arg4[%c88, %c0_38], %34 {strides = array<i32>} : memref<256x256xf32, #tpu.memory_space<vmem>>, vector<8x256xf32>,
    %c0_39 = arith.constant 0 : index
    %c0_40 = arith.constant 0 : index
    %c42 = arith.constant 42 : index
    %36 = vector.load %arg2[%c0_39, %c0_40, %c42] : memref<1x8x384xf32, #tpu.memory_space<vmem>>, vector<1x8x256xf32>
    %37 = vector.shape_cast %36 : vector<1x8x256xf32> to vector<8x256xf32>
    %c96 = arith.constant 96 : index
    %c0_41 = arith.constant 0 : index
    %38 = vector.load %arg4[%c96, %c0_41] : memref<256x256xf32, #tpu.memory_space<vmem>>, vector<8x256xf32>
    tpu.vector_store %arg4[%c96, %c0_41], %37 {strides = array<i32>} : memref<256x256xf32, #tpu.memory_space<vmem>>, vector<8x256xf32>,
    %c0_42 = arith.constant 0 : index
    %c0_43 = arith.constant 0 : index
    %c43 = arith.constant 43 : index
    %39 = vector.load %arg2[%c0_42, %c0_43, %c43] : memref<1x8x384xf32, #tpu.memory_space<vmem>>, vector<1x8x256xf32>
    %40 = vector.shape_cast %39 : vector<1x8x256xf32> to vector<8x256xf32>
    %c104 = arith.constant 104 : index
    %c0_44 = arith.constant 0 : index
    %41 = vector.load %arg4[%c104, %c0_44] : memref<256x256xf32, #tpu.memory_space<vmem>>, vector<8x256xf32>
    tpu.vector_store %arg4[%c104, %c0_44], %40 {strides = array<i32>} : memref<256x256xf32, #tpu.memory_space<vmem>>, vector<8x256xf32>,
    %c0_45 = arith.constant 0 : index
    %c0_46 = arith.constant 0 : index
    %c44 = arith.constant 44 : index
    %42 = vector.load %arg2[%c0_45, %c0_46, %c44] : memref<1x8x384xf32, #tpu.memory_space<vmem>>, vector<1x8x256xf32>
    %43 = vector.shape_cast %42 : vector<1x8x256xf32> to vector<8x256xf32>
    %c112 = arith.constant 112 : index
    %c0_47 = arith.constant 0 : index
    %44 = vector.load %arg4[%c112, %c0_47] : memref<256x256xf32, #tpu.memory_space<vmem>>, vector<8x256xf32>
    tpu.vector_store %arg4[%c112, %c0_47], %43 {strides = array<i32>} : memref<256x256xf32, #tpu.memory_space<vmem>>, vector<8x256xf32>,
    %c0_48 = arith.constant 0 : index
    %c0_49 = arith.constant 0 : index
    %c60 = arith.constant 60 : index
    %45 = vector.load %arg2[%c0_48, %c0_49, %c60] : memref<1x8x384xf32, #tpu.memory_space<vmem>>, vector<1x8x256xf32>
    %46 = vector.shape_cast %45 : vector<1x8x256xf32> to vector<8x256xf32>
    %c120 = arith.constant 120 : index
    %c0_50 = arith.constant 0 : index
    %47 = vector.load %arg4[%c120, %c0_50] : memref<256x256xf32, #tpu.memory_space<vmem>>, vector<8x256xf32>
    tpu.vector_store %arg4[%c120, %c0_50], %46 {strides = array<i32>} : memref<256x256xf32, #tpu.memory_space<vmem>>, vector<8x256xf32>,
    %c0_51 = arith.constant 0 : index
    %c0_52 = arith.constant 0 : index
    %c61 = arith.constant 61 : index
    %48 = vector.load %arg2[%c0_51, %c0_52, %c61] : memref<1x8x384xf32, #tpu.memory_space<vmem>>, vector<1x8x256xf32>
    %49 = vector.shape_cast %48 : vector<1x8x256xf32> to vector<8x256xf32>
    %c128 = arith.constant 128 : index
    %c0_53 = arith.constant 0 : index
    %50 = vector.load %arg4[%c128, %c0_53] : memref<256x256xf32, #tpu.memory_space<vmem>>, vector<8x256xf32>
    tpu.vector_store %arg4[%c128, %c0_53], %49 {strides = array<i32>} : memref<256x256xf32, #tpu.memory_space<vmem>>, vector<8x256xf32>,
    %c0_54 = arith.constant 0 : index
    %c0_55 = arith.constant 0 : index
    %c62 = arith.constant 62 : index
    %51 = vector.load %arg2[%c0_54, %c0_55, %c62] : memref<1x8x384xf32, #tpu.memory_space<vmem>>, vector<1x8x256xf32>
    %52 = vector.shape_cast %51 : vector<1x8x256xf32> to vector<8x256xf32>
    %c136 = arith.constant 136 : index
    %c0_56 = arith.constant 0 : index
    %53 = vector.load %arg4[%c136, %c0_56] : memref<256x256xf32, #tpu.memory_space<vmem>>, vector<8x256xf32>
    tpu.vector_store %arg4[%c136, %c0_56], %52 {strides = array<i32>} : memref<256x256xf32, #tpu.memory_space<vmem>>, vector<8x256xf32>,
    %c0_57 = arith.constant 0 : index
    %c0_58 = arith.constant 0 : index
    %c63 = arith.constant 63 : index
    %54 = vector.load %arg2[%c0_57, %c0_58, %c63] : memref<1x8x384xf32, #tpu.memory_space<vmem>>, vector<1x8x256xf32>
    %55 = vector.shape_cast %54 : vector<1x8x256xf32> to vector<8x256xf32>
    %c144 = arith.constant 144 : index
    %c0_59 = arith.constant 0 : index
    %56 = vector.load %arg4[%c144, %c0_59] : memref<256x256xf32, #tpu.memory_space<vmem>>, vector<8x256xf32>
    tpu.vector_store %arg4[%c144, %c0_59], %55 {strides = array<i32>} : memref<256x256xf32, #tpu.memory_space<vmem>>, vector<8x256xf32>,
    %c0_60 = arith.constant 0 : index
    %c0_61 = arith.constant 0 : index
    %c64_62 = arith.constant 64 : index
    %57 = vector.load %arg2[%c0_60, %c0_61, %c64_62] : memref<1x8x384xf32, #tpu.memory_space<vmem>>, vector<1x8x256xf32>
    %58 = vector.shape_cast %57 : vector<1x8x256xf32> to vector<8x256xf32>
    %c152 = arith.constant 152 : index
    %c0_63 = arith.constant 0 : index
    %59 = vector.load %arg4[%c152, %c0_63] : memref<256x256xf32, #tpu.memory_space<vmem>>, vector<8x256xf32>
    tpu.vector_store %arg4[%c152, %c0_63], %58 {strides = array<i32>} : memref<256x256xf32, #tpu.memory_space<vmem>>, vector<8x256xf32>,
    %c0_64 = arith.constant 0 : index
    %c0_65 = arith.constant 0 : index
    %c80_66 = arith.constant 80 : index
    %60 = vector.load %arg2[%c0_64, %c0_65, %c80_66] : memref<1x8x384xf32, #tpu.memory_space<vmem>>, vector<1x8x256xf32>
    %61 = vector.shape_cast %60 : vector<1x8x256xf32> to vector<8x256xf32>
    %c160 = arith.constant 160 : index
    %c0_67 = arith.constant 0 : index
    %62 = vector.load %arg4[%c160, %c0_67] : memref<256x256xf32, #tpu.memory_space<vmem>>, vector<8x256xf32>
    tpu.vector_store %arg4[%c160, %c0_67], %61 {strides = array<i32>} : memref<256x256xf32, #tpu.memory_space<vmem>>, vector<8x256xf32>,
    %c0_68 = arith.constant 0 : index
    %c0_69 = arith.constant 0 : index
    %c81 = arith.constant 81 : index
    %63 = vector.load %arg2[%c0_68, %c0_69, %c81] : memref<1x8x384xf32, #tpu.memory_space<vmem>>, vector<1x8x256xf32>
    %64 = vector.shape_cast %63 : vector<1x8x256xf32> to vector<8x256xf32>
    %c168 = arith.constant 168 : index
    %c0_70 = arith.constant 0 : index
    %65 = vector.load %arg4[%c168, %c0_70] : memref<256x256xf32, #tpu.memory_space<vmem>>, vector<8x256xf32>
    tpu.vector_store %arg4[%c168, %c0_70], %64 {strides = array<i32>} : memref<256x256xf32, #tpu.memory_space<vmem>>, vector<8x256xf32>,
    %c0_71 = arith.constant 0 : index
    %c0_72 = arith.constant 0 : index
    %c82 = arith.constant 82 : index
    %66 = vector.load %arg2[%c0_71, %c0_72, %c82] : memref<1x8x384xf32, #tpu.memory_space<vmem>>, vector<1x8x256xf32>
    %67 = vector.shape_cast %66 : vector<1x8x256xf32> to vector<8x256xf32>
    %c176 = arith.constant 176 : index
    %c0_73 = arith.constant 0 : index
    %68 = vector.load %arg4[%c176, %c0_73] : memref<256x256xf32, #tpu.memory_space<vmem>>, vector<8x256xf32>
    tpu.vector_store %arg4[%c176, %c0_73], %67 {strides = array<i32>} : memref<256x256xf32, #tpu.memory_space<vmem>>, vector<8x256xf32>,
    %c0_74 = arith.constant 0 : index
    %c0_75 = arith.constant 0 : index
    %c83 = arith.constant 83 : index
    %69 = vector.load %arg2[%c0_74, %c0_75, %c83] : memref<1x8x384xf32, #tpu.memory_space<vmem>>, vector<1x8x256xf32>
    %70 = vector.shape_cast %69 : vector<1x8x256xf32> to vector<8x256xf32>
    %c184 = arith.constant 184 : index
    %c0_76 = arith.constant 0 : index
    %71 = vector.load %arg4[%c184, %c0_76] : memref<256x256xf32, #tpu.memory_space<vmem>>, vector<8x256xf32>
    tpu.vector_store %arg4[%c184, %c0_76], %70 {strides = array<i32>} : memref<256x256xf32, #tpu.memory_space<vmem>>, vector<8x256xf32>,
    %c0_77 = arith.constant 0 : index
    %c0_78 = arith.constant 0 : index
    %c84 = arith.constant 84 : index
    %72 = vector.load %arg2[%c0_77, %c0_78, %c84] : memref<1x8x384xf32, #tpu.memory_space<vmem>>, vector<1x8x256xf32>
    %73 = vector.shape_cast %72 : vector<1x8x256xf32> to vector<8x256xf32>
    %c192 = arith.constant 192 : index
    %c0_79 = arith.constant 0 : index
    %74 = vector.load %arg4[%c192, %c0_79] : memref<256x256xf32, #tpu.memory_space<vmem>>, vector<8x256xf32>
    tpu.vector_store %arg4[%c192, %c0_79], %73 {strides = array<i32>} : memref<256x256xf32, #tpu.memory_space<vmem>>, vector<8x256xf32>,
    %75 = tpu.iota {dimensions = array<i32: 0>} : vector<8x256xi32>
    %c0_i32 = arith.constant 0 : i32
    %76 = vector.broadcast %c0_i32 : i32 to vector<8x256xi32>
    %77 = arith.cmpi eq, %75, %76 : vector<8x256xi32>
    %cst = arith.constant 1.000000e+00 : f32
    %cst_80 = arith.constant 0.000000e+00 : f32
    %78 = vector.broadcast %cst : f32 to vector<8x256xf32>
    %79 = vector.broadcast %cst_80 : f32 to vector<8x256xf32>
    %80 = arith.select %77, %78, %79 : vector<8x256xi1>, vector<8x256xf32>
    %cst_81 = arith.constant 0.000000e+00 : f32
    %81 = vector.broadcast %cst_81 : f32 to vector<8x256xf32>
    %c200 = arith.constant 200 : index
    %c0_82 = arith.constant 0 : index
    %82 = vector.load %arg4[%c200, %c0_82] : memref<256x256xf32, #tpu.memory_space<vmem>>, vector<8x256xf32>
    tpu.vector_store %arg4[%c200, %c0_82], %80 {strides = array<i32>} : memref<256x256xf32, #tpu.memory_space<vmem>>, vector<8x256xf32>,
    %c208 = arith.constant 208 : index
    %c0_83 = arith.constant 0 : index
    %83 = vector.load %arg4[%c208, %c0_83] : memref<256x256xf32, #tpu.memory_space<vmem>>, vector<8x256xf32>
    tpu.vector_store %arg4[%c208, %c0_83], %81 {strides = array<i32>} : memref<256x256xf32, #tpu.memory_space<vmem>>, vector<8x256xf32>,
    %c216 = arith.constant 216 : index
    %c0_84 = arith.constant 0 : index
    %84 = vector.load %arg4[%c216, %c0_84] : memref<256x256xf32, #tpu.memory_space<vmem>>, vector<8x256xf32>
    tpu.vector_store %arg4[%c216, %c0_84], %81 {strides = array<i32>} : memref<256x256xf32, #tpu.memory_space<vmem>>, vector<8x256xf32>,
    %c224 = arith.constant 224 : index
    %c0_85 = arith.constant 0 : index
    %85 = vector.load %arg4[%c224, %c0_85] : memref<256x256xf32, #tpu.memory_space<vmem>>, vector<8x256xf32>
    tpu.vector_store %arg4[%c224, %c0_85], %81 {strides = array<i32>} : memref<256x256xf32, #tpu.memory_space<vmem>>, vector<8x256xf32>,
    %c232 = arith.constant 232 : index
    %c0_86 = arith.constant 0 : index
    %86 = vector.load %arg4[%c232, %c0_86] : memref<256x256xf32, #tpu.memory_space<vmem>>, vector<8x256xf32>
    tpu.vector_store %arg4[%c232, %c0_86], %81 {strides = array<i32>} : memref<256x256xf32, #tpu.memory_space<vmem>>, vector<8x256xf32>,
    %c240 = arith.constant 240 : index
    %c0_87 = arith.constant 0 : index
    %87 = vector.load %arg4[%c240, %c0_87] : memref<256x256xf32, #tpu.memory_space<vmem>>, vector<8x256xf32>
    tpu.vector_store %arg4[%c240, %c0_87], %81 {strides = array<i32>} : memref<256x256xf32, #tpu.memory_space<vmem>>, vector<8x256xf32>,
    %c248 = arith.constant 248 : index
    %c0_88 = arith.constant 0 : index
    %88 = vector.load %arg4[%c248, %c0_88] : memref<256x256xf32, #tpu.memory_space<vmem>>, vector<8x256xf32>
    tpu.vector_store %arg4[%c248, %c0_88], %81 {strides = array<i32>} : memref<256x256xf32, #tpu.memory_space<vmem>>, vector<8x256xf32>,
    %c0_89 = arith.constant 0 : index
    %c0_90 = arith.constant 0 : index
    %89 = vector.load %arg1[%c0_89, %c0_90] : memref<8x256xf32, #tpu.memory_space<vmem>>, vector<8x256xf32>
    %c0_91 = arith.constant 0 : index
    %c0_92 = arith.constant 0 : index
    %90 = vector.load %arg4[%c0_91, %c0_92] : memref<256x256xf32, #tpu.memory_space<vmem>>, vector<256x256xf32>
    %cst_93 = arith.constant dense<0.000000e+00> : vector<8x256xf32>
    %91 = tpu.matmul %89, %90, %cst_93 {dimension_numbers = #tpu.dot_dimension_numbers<[1], [0], [0], [1], [0, 0, 1, 1], [], []>} : vector<8x256xf32>, vector<256x256xf32>, vector<8x256xf32> -> vector<8x256xf32>
    %92 = arith.mulf %91, %91 : vector<8x256xf32>
    %cst_94 = arith.constant 4.471500e-02 : f32
    %93 = vector.broadcast %cst_94 : f32 to vector<8x256xf32>
    %94 = arith.mulf %93, %92 : vector<8x256xf32>
    %cst_95 = arith.constant 1.000000e+00 : f32
    %95 = vector.broadcast %cst_95 : f32 to vector<8x256xf32>
    %96 = arith.addf %95, %94 : vector<8x256xf32>
    %97 = arith.mulf %91, %96 : vector<8x256xf32>
    %cst_96 = arith.constant 0.797884583 : f32
    %98 = vector.broadcast %cst_96 : f32 to vector<8x256xf32>
    %99 = arith.mulf %97, %98 : vector<8x256xf32>
    %100 = math.tanh %99 : vector<8x256xf32>
    %cst_97 = arith.constant 5.000000e-01 : f32
    %101 = vector.broadcast %cst_97 : f32 to vector<8x256xf32>
    %102 = arith.mulf %101, %91 : vector<8x256xf32>
    %cst_98 = arith.constant 1.000000e+00 : f32
    %103 = vector.broadcast %cst_98 : f32 to vector<8x256xf32>
    %104 = arith.addf %100, %103 : vector<8x256xf32>
    %105 = arith.mulf %102, %104 : vector<8x256xf32>
    %c0_99 = arith.constant 0 : index
    %c0_100 = arith.constant 0 : index
    %c0_101 = arith.constant 0 : index
    %106 = vector.load %arg3[%c0_99, %c0_100, %c0_101] : memref<1x8x256xf32, #tpu.memory_space<vmem>>, vector<1x8x256xf32>
    %107 = vector.shape_cast %106 : vector<1x8x256xf32> to vector<8x256xf32>
    %108 = vector.shape_cast %105 : vector<8x256xf32> to vector<1x8x256xf32>
    tpu.vector_store %arg3[%c0_99, %c0_100, %c0_101], %108 {strides = array<i32>} : memref<1x8x256xf32, #tpu.memory_space<vmem>>, vector<1x8x256xf32>,
    return
  }
  func.func @transform_0(%arg0: i32) -> (i32, i32) {
    %c0_i32 = arith.constant 0 : i32
    %c0_i32_0 = arith.constant 0 : i32
    %c0_i32_1 = arith.constant 0 : i32
    return %c0_i32, %c0_i32_0 : i32, i32
  }
  func.func @transform_1(%arg0: i32) -> (i32, i32, i32) {
    %c0_i32 = arith.constant 0 : i32
    %c0_i32_0 = arith.constant 0 : i32
    %c0_i32_1 = arith.constant 0 : i32
    return %arg0, %c0_i32, %c0_i32_0 : i32, i32, i32
  }
  func.func @transform_2(%arg0: i32) -> (i32, i32, i32) {
    %c0_i32 = arith.constant 0 : i32
    %c0_i32_0 = arith.constant 0 : i32
    %c0_i32_1 = arith.constant 0 : i32
    return %arg0, %c0_i32, %c0_i32_0 : i32, i32, i32
  }
}

</mosaic_0001>

<llo_original>
// kernel: tpu_custom_call.1
$region0: #{tpu_custom_call.1}
  #allocation0 [shape = 'u32[]', space=smem, size = 0x4, offset = 0x4, fixed_abs, tag = 'smem constant byte address 0x4 - core index']
  #allocation1 [shape = 'u32[144,128]{1,0:T(1,128)}', space=vmem, size = 0x12000, scoped, tag = 'internal scratch']
  #allocation2 [shape = 'f32[256,256]{1,0:T(8,128)}', space=vmem, size = 0x40000, scoped, tag = 'scratch operand']
  %s0 = inlined_call_operand.hbm [shape: f32[8,256], index: 0, kind: input, shape index: {}]
  %s1 = inlined_call_operand.hbm [shape: f32[2,8,384], index: 1, kind: input, shape index: {}]
  %s2 = inlined_call_operand.hbm [shape: f32[2,8,256], index: 2, kind: output, shape index: {}]
  %s3 = sld [smem:[#allocation0]]
  $region49: #{tpu_custom_call.1} parent=0
    _
  %s5 = ssub.s32 1, %s3
  %s6 = scalar_select 0, %s5, %s3
  $region1: #{tpu_custom_call.1} parent=0
    #allocation3 [shape = 'u8[8192]{0}', space=vmem, size = 0x2000, scoped, tag = 'input window, operand 0, single buffered']
    #allocation4 [shape = 's32[2]{0}', space=sflag, size = 0x8, scoped, tag = 'scoped memory for tpu_custom_call.1']
    #allocation5 [shape = 's32[2]{0}', space=sflag, size = 0x8, scoped, tag = 'scoped memory for tpu_custom_call.1']
    #allocation6 [shape = 'u8[24576]{0}', space=vmem, size = 0x6000, scoped, tag = 'input window, operand 1']
    #allocation7 [shape = 's32[2]{0}', space=sflag, size = 0x8, scoped, tag = 'scoped memory for tpu_custom_call.1']
    #allocation8 [shape = 'u8[16384]{0}', space=vmem, size = 0x4000, scoped, tag = 'output window, operand 0']
    %7 = vsyncpa [#allocation4], 0
    %8 = vsyncpa [#allocation7], 0
    %s9 = scalar_lea.sflag [#allocation7], 1
    %10 = vsyncpa %s9, 0
    %11 = vsyncpa [#allocation5], 0
    %s12 = scalar_lea.sflag [#allocation5], 1
    %13 = vsyncpa %s12, 0
    loop: start=0, step=1, limit=4
    $region2: #{tpu_custom_call.1} parent=1 // loop_pre_header
      _
    $region3: #{tpu_custom_call.1} parent=1 // loop_header
      %s15 = sphi 0, %s19
      %p16 = scmp.ge.s32.totalorder %s15, 4
      %s23 = sphi 0, %s23
      %s25 = sphi 0, %s23
      %s26 = sphi 0, %s25
      %s40 = sphi 0, %s26
      %s46 = sphi 0, %s48
      %s49 = sphi 0, %s46
      %s50 = sphi 0, %s49
      %s66 = sphi 0, %s50
      %s72 = sphi 0, %s74
      %s75 = sphi 0, %s72
      %s76 = sphi 0, %s75
      %s92 = sphi 0, %s76
    $region4: #{tpu_custom_call.1} parent=1 // loop_header_branch
      %18 = sbr.rel (%p16) target = $region8
    $region5: #{tpu_custom_call.1} parent=1 // loop_body
      %s20 = ssub.s32 %s15, 1
      %s21 = ssub.s32 %s15, 2
      %s22 = sadd.s32 %s15, 1
      %s24 = sadd.s32 %s23, 1
      %p27 = scmp.eq.s32.totalorder %s15, 1
      %p28 = scmp.ne.s32.totalorder %s23, %s25
      %p29 = scmp.eq.s32.totalorder %s15, 0
      %p30 = por %p28, %p29
      %p31 = scmp.ne.s32.totalorder %s23, %s25
      %p32 = scmp.eq.s32.totalorder %s20, 1
      %p33 = por %p31, %p32
      %p34 = scmp.ne.s32.totalorder %s25, %s26
      %p35 = scmp.eq.s32.totalorder %s20, 0
      %p36 = por %p34, %p35
      %p37 = scmp.ne.s32.totalorder %s25, %s26
      %p38 = scmp.eq.s32.totalorder %s21, 1
      %p39 = por %p37, %p38
      %p41 = scmp.ne.s32.totalorder %s26, %s40
      %p42 = scmp.eq.s32.totalorder %s21, 0
      %p43 = por %p41, %p42
      %s44 = ssub.s32 %s15, %s22
      %p45 = scmp.eq.s32.totalorder %s44, 0
      %s47 = sadd.s32 %s46, 1
      %s48 = scalar_select %p45, %s46, %s47
      %p51 = pneg %p45
      %p52 = scmp.eq.s32.totalorder %s15, 1
      %p53 = por %p51, %p52
      %p54 = scmp.ne.s32.totalorder %s46, %s49
      %p55 = scmp.eq.s32.totalorder %s15, 0
      %p56 = por %p54, %p55
      %p57 = scmp.ne.s32.totalorder %s46, %s49
      %p58 = scmp.eq.s32.totalorder %s20, 1
      %p59 = por %p57, %p58
      %p60 = scmp.ne.s32.totalorder %s49, %s50
      %p61 = scmp.eq.s32.totalorder %s20, 0
      %p62 = por %p60, %p61
      %p63 = scmp.ne.s32.totalorder %s49, %s50
      %p64 = scmp.eq.s32.totalorder %s21, 1
      %p65 = por %p63, %p64
      %p67 = scmp.ne.s32.totalorder %s50, %s66
      %p68 = scmp.eq.s32.totalorder %s21, 0
      %p69 = por %p67, %p68
      %s70 = ssub.s32 %s15, %s22
      %p71 = scmp.eq.s32.totalorder %s70, 0
      %s73 = sadd.s32 %s72, 1
      %s74 = scalar_select %p71, %s72, %s73
      %p77 = pneg %p71
      %p78 = scmp.eq.s32.totalorder %s15, 1
      %p79 = por %p77, %p78
      %p80 = scmp.ne.s32.totalorder %s72, %s75
      %p81 = scmp.eq.s32.totalorder %s15, 0
      %p82 = por %p80, %p81
      %p83 = scmp.ne.s32.totalorder %s72, %s75
      %p84 = scmp.eq.s32.totalorder %s20, 1
      %p85 = por %p83, %p84
      %p86 = scmp.ne.s32.totalorder %s75, %s76
      %p87 = scmp.eq.s32.totalorder %s20, 0
      %p88 = por %p86, %p87
      %p89 = scmp.ne.s32.totalorder %s75, %s76
      %p90 = scmp.eq.s32.totalorder %s21, 1
      %p91 = por %p89, %p90
      %p93 = scmp.ne.s32.totalorder %s76, %s92
      %p94 = scmp.eq.s32.totalorder %s21, 0
      %p95 = por %p93, %p94
      %p96 = scmp.le.s32.totalorder 1, %s15
      %p97 = scmp.lt.s32.totalorder %s15, 3
      %p98 = pnand %p96, %p97
      %p99 = pneg %p98
      // Predicated region
      $region9: #{tpu_custom_call.1} parent=5 // pred_check
        _
      $region10: #{tpu_custom_call.1} parent=5 // pred_check_branch
        %101 = sbr.rel (%p98) target = $region12
      $region11: #{tpu_custom_call.1} parent=5 // pred_region
        %s102 = ssub.s32 %s15, 1
        // Predicated region
        $region13: #{tpu_custom_call.1} parent=11 // pred_check
          %p103 = pneg %p36
        $region14: #{tpu_custom_call.1} parent=11 // pred_check_branch
          %105 = sbr.rel (%p103) target = $region16
        $region15: #{tpu_custom_call.1} parent=11 // pred_region
          %s107 = ssub.s32 256, 256
          %108 = vsyncadd [#allocation4], %s107
          %s110 = sshll.u32 [#allocation3], 4
          %s111 = int_to_ptr.vmem [resolvable:$true] %s110
          %113 = dma.hbm_to_vmem [thread:$0]  %s0, 256, %s111, [#allocation4]
        $region16: #{tpu_custom_call.1} parent=11 // pred_fallthru
          _
      $region12: #{tpu_custom_call.1} parent=5 // pred_fallthru
        _
      %p114 = scmp.lt.s32.totalorder %s15, 2
      // Predicated region
      $region17: #{tpu_custom_call.1} parent=5 // pred_check
        %p115 = pneg %p114
      $region18: #{tpu_custom_call.1} parent=5 // pred_check_branch
        %117 = sbr.rel (%p115) target = $region20
      $region19: #{tpu_custom_call.1} parent=5 // pred_region
        // Predicated region
        $region21: #{tpu_custom_call.1} parent=19 // pred_check
          %p118 = pneg %p56
        $region22: #{tpu_custom_call.1} parent=19 // pred_check_branch
          %120 = sbr.rel (%p118) target = $region24
        $region23: #{tpu_custom_call.1} parent=19 // pred_region
          %s121 = sand.u32 %s46, 1
          %s122 = scalar_lea.sflag [#allocation7], %s121
          %s123 = sand.u32 %s46, 1
          %s124 = smul.addr %s123, 24
          %s125 = scalar_lea.vmem [#allocation6], %s124
          %s127 = ssub.s32 384, 384
          %128 = vsyncadd %s122, %s127
          %s129 = smul.addr %s15, 3
          %s130 = smul.addr %s129, 128
          %s131 = scalar_lea.hbm %s1, %s130
          %s133 = sshll.u32 %s125, 4
          %s134 = int_to_ptr.vmem [resolvable:$true] %s133
          %136 = dma.hbm_to_vmem [thread:$0]  %s131, 384, %s134, %s122
        $region24: #{tpu_custom_call.1} parent=19 // pred_fallthru
          _
      $region20: #{tpu_custom_call.1} parent=5 // pred_fallthru
        _
      %p137 = scmp.le.s32.totalorder 1, %s15
      %p138 = scmp.lt.s32.totalorder %s15, 3
      %p139 = pnand %p137, %p138
      %p140 = pneg %p139
      // Predicated region
      $region25: #{tpu_custom_call.1} parent=5 // pred_check
        _
      $region26: #{tpu_custom_call.1} parent=5 // pred_check_branch
        %142 = sbr.rel (%p139) target = $region28
      $region27: #{tpu_custom_call.1} parent=5 // pred_region
        %s143 = ssub.s32 %s15, 1
        // Predicated region
        $region29: #{tpu_custom_call.1} parent=27 // pred_check
          %p144 = pneg %p36
        $region30: #{tpu_custom_call.1} parent=27 // pred_check_branch
          %146 = sbr.rel (%p144) target = $region32
        $region31: #{tpu_custom_call.1} parent=27 // pred_region
          %147 = dma.done [#allocation4], 256
        $region32: #{tpu_custom_call.1} parent=27 // pred_fallthru
          _
        %s148 = sand.u32 %s49, 1
        %s149 = scalar_lea.sflag [#allocation7], %s148
        %s150 = sand.u32 %s49, 1
        %s151 = smul.addr %s150, 24
        %s152 = scalar_lea.vmem [#allocation6], %s151
        // Predicated region
        $region33: #{tpu_custom_call.1} parent=27 // pred_check
          %p153 = pneg %p62
        $region34: #{tpu_custom_call.1} parent=27 // pred_check_branch
          %155 = sbr.rel (%p153) target = $region36
        $region35: #{tpu_custom_call.1} parent=27 // pred_region
          %156 = dma.done %s149, 384
        $region36: #{tpu_custom_call.1} parent=27 // pred_fallthru
          _
        %p157 = pneg %p36
        %p158 = pneg %p33
        %s159 = sand.u32 %s49, 1
        %s160 = scalar_lea.sflag [#allocation7], %s159
        %s161 = sand.u32 %s49, 1
        %s162 = smul.addr %s161, 24
        %s163 = scalar_lea.vmem [#allocation6], %s162
        %p164 = pneg %p62
        %p165 = pneg %p59
        %p166 = pneg %p88
        %p167 = pneg %p85
        %s168 = sand.u32 %s75, 1
        %s169 = scalar_lea.sflag [#allocation5], %s168
        %s170 = sand.u32 %s75, 1
        %s171 = smul.addr %s170, 16
        %s172 = scalar_lea.vmem [#allocation8], %s171
        %v173 = vld [vmem:[%s152] sm:$0xff]
        %v174 = vld [vmem:[%s152 + $0x8] sm:$0xff]
        %175 = vst [vmem:[#allocation2] sm:$0xff] %v173
        %176 = vst [vmem:[#allocation2 + $0x8] sm:$0xff] %v174
        %v177 = vld [vmem:[%s152] sm:$0xff]
        %v178 = vld [vmem:[%s152 + $0x8] sm:$0xff]
        %v179 = vld [vmem:[%s152 + $0x10] sm:$0xff]
        %183 = vrot.lane.b32.xlu0 %v177, 127
        %v184 = vpop.permute.xlu0 %183
        %185 = vrot.lane.b32.xlu0 %v178, 127
        %v186 = vpop.permute.xlu0 %185
        %187 = vrot.lane.b32.xlu0 %v179, 127
        %v188 = vpop.permute.xlu0 %187
        %vm189 = vcmask 1039360
        %v190 = vsel %vm189, %v184, %v186
        %v191 = vsel %vm189, %v186, %v188
        %194 = vst [vmem:[#allocation2 + $0x10] sm:$0xff] %v190
        %195 = vst [vmem:[#allocation2 + $0x18] sm:$0xff] %v191
        %v196 = vld [vmem:[%s152] sm:$0xff]
        %v197 = vld [vmem:[%s152 + $0x8] sm:$0xff]
        %v198 = vld [vmem:[%s152 + $0x10] sm:$0xff]
        %202 = vrot.lane.b32.xlu0 %v196, 126
        %v203 = vpop.permute.xlu0 %202
        %204 = vrot.lane.b32.xlu0 %v197, 126
        %v205 = vpop.permute.xlu0 %204
        %206 = vrot.lane.b32.xlu0 %v198, 126
        %v207 = vpop.permute.xlu0 %206
        %vm208 = vcmask 1031168
        %v209 = vsel %vm208, %v203, %v205
        %v210 = vsel %vm208, %v205, %v207
        %213 = vst [vmem:[#allocation2 + $0x20] sm:$0xff] %v209
        %214 = vst [vmem:[#allocation2 + $0x28] sm:$0xff] %v210
        %v215 = vld [vmem:[%s152] sm:$0xff]
        %v216 = vld [vmem:[%s152 + $0x8] sm:$0xff]
        %v217 = vld [vmem:[%s152 + $0x10] sm:$0xff]
        %221 = vrot.lane.b32.xlu0 %v215, 125
        %v222 = vpop.permute.xlu0 %221
        %223 = vrot.lane.b32.xlu0 %v216, 125
        %v224 = vpop.permute.xlu0 %223
        %225 = vrot.lane.b32.xlu0 %v217, 125
        %v226 = vpop.permute.xlu0 %225
        %vm227 = vcmask 1022976
        %v228 = vsel %vm227, %v222, %v224
        %v229 = vsel %vm227, %v224, %v226
        %232 = vst [vmem:[#allocation2 + $0x30] sm:$0xff] %v228
        %233 = vst [vmem:[#allocation2 + $0x38] sm:$0xff] %v229
        %v234 = vld [vmem:[%s152] sm:$0xff]
        %v235 = vld [vmem:[%s152 + $0x8] sm:$0xff]
        %v236 = vld [vmem:[%s152 + $0x10] sm:$0xff]
        %240 = vrot.lane.b32.xlu0 %v234, 124
        %v241 = vpop.permute.xlu0 %240
        %242 = vrot.lane.b32.xlu0 %v235, 124
        %v243 = vpop.permute.xlu0 %242
        %244 = vrot.lane.b32.xlu0 %v236, 124
        %v245 = vpop.permute.xlu0 %244
        %vm246 = vcmask 1014784
        %v247 = vsel %vm246, %v241, %v243
        %v248 = vsel %vm246, %v243, %v245
        %251 = vst [vmem:[#allocation2 + $0x40] sm:$0xff] %v247
        %252 = vst [vmem:[#allocation2 + $0x48] sm:$0xff] %v248
        %v253 = vld [vmem:[%s152] sm:$0xff]
        %v254 = vld [vmem:[%s152 + $0x8] sm:$0xff]
        %v255 = vld [vmem:[%s152 + $0x10] sm:$0xff]
        %259 = vrot.lane.b32.xlu0 %v253, 108
        %v260 = vpop.permute.xlu0 %259
        %261 = vrot.lane.b32.xlu0 %v254, 108
        %v262 = vpop.permute.xlu0 %261
        %263 = vrot.lane.b32.xlu0 %v255, 108
        %v264 = vpop.permute.xlu0 %263
        %vm265 = vcmask 883712
        %v266 = vsel %vm265, %v260, %v262
        %v267 = vsel %vm265, %v262, %v264
        %270 = vst [vmem:[#allocation2 + $0x50] sm:$0xff] %v266
        %271 = vst [vmem:[#allocation2 + $0x58] sm:$0xff] %v267
        %v272 = vld [vmem:[%s152] sm:$0xff]
        %v273 = vld [vmem:[%s152 + $0x8] sm:$0xff]
        %v274 = vld [vmem:[%s152 + $0x10] sm:$0xff]
        %278 = vrot.lane.b32.xlu0 %v272, 107
        %v279 = vpop.permute.xlu0 %278
        %280 = vrot.lane.b32.xlu0 %v273, 107
        %v281 = vpop.permute.xlu0 %280
        %282 = vrot.lane.b32.xlu0 %v274, 107
        %v283 = vpop.permute.xlu0 %282
        %vm284 = vcmask 875520
        %v285 = vsel %vm284, %v279, %v281
        %v286 = vsel %vm284, %v281, %v283
        %289 = vst [vmem:[#allocation2 + $0x60] sm:$0xff] %v285
        %290 = vst [vmem:[#allocation2 + $0x68] sm:$0xff] %v286
        %v291 = vld [vmem:[%s152] sm:$0xff]
        %v292 = vld [vmem:[%s152 + $0x8] sm:$0xff]
        %v293 = vld [vmem:[%s152 + $0x10] sm:$0xff]
        %297 = vrot.lane.b32.xlu0 %v291, 106
        %v298 = vpop.permute.xlu0 %297
        %299 = vrot.lane.b32.xlu0 %v292, 106
        %v300 = vpop.permute.xlu0 %299
        %301 = vrot.lane.b32.xlu0 %v293, 106
        %v302 = vpop.permute.xlu0 %301
        %vm303 = vcmask 867328
        %v304 = vsel %vm303, %v298, %v300
        %v305 = vsel %vm303, %v300, %v302
        %308 = vst [vmem:[#allocation2 + $0x70] sm:$0xff] %v304
        %309 = vst [vmem:[#allocation2 + $0x78] sm:$0xff] %v305
        %v310 = vld [vmem:[%s152] sm:$0xff]
        %v311 = vld [vmem:[%s152 + $0x8] sm:$0xff]
        %v312 = vld [vmem:[%s152 + $0x10] sm:$0xff]
        %316 = vrot.lane.b32.xlu0 %v310, 105
        %v317 = vpop.permute.xlu0 %316
        %318 = vrot.lane.b32.xlu0 %v311, 105
        %v319 = vpop.permute.xlu0 %318
        %320 = vrot.lane.b32.xlu0 %v312, 105
        %v321 = vpop.permute.xlu0 %320
        %vm322 = vcmask 859136
        %v323 = vsel %vm322, %v317, %v319
        %v324 = vsel %vm322, %v319, %v321
        %327 = vst [vmem:[#allocation2 + $0x80] sm:$0xff] %v323
        %328 = vst [vmem:[#allocation2 + $0x88] sm:$0xff] %v324
        %v329 = vld [vmem:[%s152] sm:$0xff]
        %v330 = vld [vmem:[%s152 + $0x8] sm:$0xff]
        %v331 = vld [vmem:[%s152 + $0x10] sm:$0xff]
        %335 = vrot.lane.b32.xlu0 %v329, 104
        %v336 = vpop.permute.xlu0 %335
        %337 = vrot.lane.b32.xlu0 %v330, 104
        %v338 = vpop.permute.xlu0 %337
        %339 = vrot.lane.b32.xlu0 %v331, 104
        %v340 = vpop.permute.xlu0 %339
        %vm341 = vcmask 850944
        %v342 = vsel %vm341, %v336, %v338
        %v343 = vsel %vm341, %v338, %v340
        %346 = vst [vmem:[#allocation2 + $0x90] sm:$0xff] %v342
        %347 = vst [vmem:[#allocation2 + $0x98] sm:$0xff] %v343
        %v348 = vld [vmem:[%s152] sm:$0xff]
        %v349 = vld [vmem:[%s152 + $0x8] sm:$0xff]
        %v350 = vld [vmem:[%s152 + $0x10] sm:$0xff]
        %354 = vrot.lane.b32.xlu0 %v348, 88
        %v355 = vpop.permute.xlu0 %354
        %356 = vrot.lane.b32.xlu0 %v349, 88
        %v357 = vpop.permute.xlu0 %356
        %358 = vrot.lane.b32.xlu0 %v350, 88
        %v359 = vpop.permute.xlu0 %358
        %vm360 = vcmask 719872
        %v361 = vsel %vm360, %v355, %v357
        %v362 = vsel %vm360, %v357, %v359
        %365 = vst [vmem:[#allocation2 + $0xa0] sm:$0xff] %v361
        %366 = vst [vmem:[#allocation2 + $0xa8] sm:$0xff] %v362
        %v367 = vld [vmem:[%s152] sm:$0xff]
        %v368 = vld [vmem:[%s152 + $0x8] sm:$0xff]
        %v369 = vld [vmem:[%s152 + $0x10] sm:$0xff]
        %373 = vrot.lane.b32.xlu0 %v367, 87
        %v374 = vpop.permute.xlu0 %373
        %375 = vrot.lane.b32.xlu0 %v368, 87
        %v376 = vpop.permute.xlu0 %375
        %377 = vrot.lane.b32.xlu0 %v369, 87
        %v378 = vpop.permute.xlu0 %377
        %vm379 = vcmask 711680
        %v380 = vsel %vm379, %v374, %v376
        %v381 = vsel %vm379, %v376, %v378
        %384 = vst [vmem:[#allocation2 + $0xb0] sm:$0xff] %v380
        %385 = vst [vmem:[#allocation2 + $0xb8] sm:$0xff] %v381
        %v386 = vld [vmem:[%s152] sm:$0xff]
        %v387 = vld [vmem:[%s152 + $0x8] sm:$0xff]
        %v388 = vld [vmem:[%s152 + $0x10] sm:$0xff]
        %392 = vrot.lane.b32.xlu0 %v386, 86
        %v393 = vpop.permute.xlu0 %392
        %394 = vrot.lane.b32.xlu0 %v387, 86
        %v395 = vpop.permute.xlu0 %394
        %396 = vrot.lane.b32.xlu0 %v388, 86
        %v397 = vpop.permute.xlu0 %396
        %vm398 = vcmask 703488
        %v399 = vsel %vm398, %v393, %v395
        %v400 = vsel %vm398, %v395, %v397
        %403 = vst [vmem:[#allocation2 + $0xc0] sm:$0xff] %v399
        %404 = vst [vmem:[#allocation2 + $0xc8] sm:$0xff] %v400
        %v405 = vld [vmem:[%s152] sm:$0xff]
        %v406 = vld [vmem:[%s152 + $0x8] sm:$0xff]
        %v407 = vld [vmem:[%s152 + $0x10] sm:$0xff]
        %411 = vrot.lane.b32.xlu0 %v405, 85
        %v412 = vpop.permute.xlu0 %411
        %413 = vrot.lane.b32.xlu0 %v406, 85
        %v414 = vpop.permute.xlu0 %413
        %415 = vrot.lane.b32.xlu0 %v407, 85
        %v416 = vpop.permute.xlu0 %415
        %vm417 = vcmask 695296
        %v418 = vsel %vm417, %v412, %v414
        %v419 = vsel %vm417, %v414, %v416
        %422 = vst [vmem:[#allocation2 + $0xd0] sm:$0xff] %v418
        %423 = vst [vmem:[#allocation2 + $0xd8] sm:$0xff] %v419
        %v424 = vld [vmem:[%s152] sm:$0xff]
        %v425 = vld [vmem:[%s152 + $0x8] sm:$0xff]
        %v426 = vld [vmem:[%s152 + $0x10] sm:$0xff]
        %430 = vrot.lane.b32.xlu0 %v424, 84
        %v431 = vpop.permute.xlu0 %430
        %432 = vrot.lane.b32.xlu0 %v425, 84
        %v433 = vpop.permute.xlu0 %432
        %434 = vrot.lane.b32.xlu0 %v426, 84
        %v435 = vpop.permute.xlu0 %434
        %vm436 = vcmask 687104
        %v437 = vsel %vm436, %v431, %v433
        %v438 = vsel %vm436, %v433, %v435
        %441 = vst [vmem:[#allocation2 + $0xe0] sm:$0xff] %v437
        %442 = vst [vmem:[#allocation2 + $0xe8] sm:$0xff] %v438
        %v443 = vld [vmem:[%s152] sm:$0xff]
        %v444 = vld [vmem:[%s152 + $0x8] sm:$0xff]
        %v445 = vld [vmem:[%s152 + $0x10] sm:$0xff]
        %449 = vrot.lane.b32.xlu0 %v443, 68
        %v450 = vpop.permute.xlu0 %449
        %451 = vrot.lane.b32.xlu0 %v444, 68
        %v452 = vpop.permute.xlu0 %451
        %453 = vrot.lane.b32.xlu0 %v445, 68
        %v454 = vpop.permute.xlu0 %453
        %vm455 = vcmask 556032
        %v456 = vsel %vm455, %v450, %v452
        %v457 = vsel %vm455, %v452, %v454
        %460 = vst [vmem:[#allocation2 + $0xf0] sm:$0xff] %v456
        %461 = vst [vmem:[#allocation2 + $0xf8] sm:$0xff] %v457
        %v462 = vld [vmem:[%s152] sm:$0xff]
        %v463 = vld [vmem:[%s152 + $0x8] sm:$0xff]
        %v464 = vld [vmem:[%s152 + $0x10] sm:$0xff]
        %468 = vrot.lane.b32.xlu0 %v462, 67
        %v469 = vpop.permute.xlu0 %468
        %470 = vrot.lane.b32.xlu0 %v463, 67
        %v471 = vpop.permute.xlu0 %470
        %472 = vrot.lane.b32.xlu0 %v464, 67
        %v473 = vpop.permute.xlu0 %472
        %vm474 = vcmask 547840
        %v475 = vsel %vm474, %v469, %v471
        %v476 = vsel %vm474, %v471, %v473
        %479 = vst [vmem:[#allocation2 + $0x100] sm:$0xff] %v475
        %480 = vst [vmem:[#allocation2 + $0x108] sm:$0xff] %v476
        %v481 = vld [vmem:[%s152] sm:$0xff]
        %v482 = vld [vmem:[%s152 + $0x8] sm:$0xff]
        %v483 = vld [vmem:[%s152 + $0x10] sm:$0xff]
        %487 = vrot.lane.b32.xlu0 %v481, 66
        %v488 = vpop.permute.xlu0 %487
        %489 = vrot.lane.b32.xlu0 %v482, 66
        %v490 = vpop.permute.xlu0 %489
        %491 = vrot.lane.b32.xlu0 %v483, 66
        %v492 = vpop.permute.xlu0 %491
        %vm493 = vcmask 539648
        %v494 = vsel %vm493, %v488, %v490
        %v495 = vsel %vm493, %v490, %v492
        %498 = vst [vmem:[#allocation2 + $0x110] sm:$0xff] %v494
        %499 = vst [vmem:[#allocation2 + $0x118] sm:$0xff] %v495
        %v500 = vld [vmem:[%s152] sm:$0xff]
        %v501 = vld [vmem:[%s152 + $0x8] sm:$0xff]
        %v502 = vld [vmem:[%s152 + $0x10] sm:$0xff]
        %506 = vrot.lane.b32.xlu0 %v500, 65
        %v507 = vpop.permute.xlu0 %506
        %508 = vrot.lane.b32.xlu0 %v501, 65
        %v509 = vpop.permute.xlu0 %508
        %510 = vrot.lane.b32.xlu0 %v502, 65
        %v511 = vpop.permute.xlu0 %510
        %vm512 = vcmask 531456
        %v513 = vsel %vm512, %v507, %v509
        %v514 = vsel %vm512, %v509, %v511
        %517 = vst [vmem:[#allocation2 + $0x120] sm:$0xff] %v513
        %518 = vst [vmem:[#allocation2 + $0x128] sm:$0xff] %v514
        %v519 = vld [vmem:[%s152] sm:$0xff]
        %v520 = vld [vmem:[%s152 + $0x8] sm:$0xff]
        %v521 = vld [vmem:[%s152 + $0x10] sm:$0xff]
        %525 = vrot.lane.b32.xlu0 %v519, 64
        %v526 = vpop.permute.xlu0 %525
        %527 = vrot.lane.b32.xlu0 %v520, 64
        %v528 = vpop.permute.xlu0 %527
        %529 = vrot.lane.b32.xlu0 %v521, 64
        %v530 = vpop.permute.xlu0 %529
        %vm531 = vcmask 523264
        %v532 = vsel %vm531, %v526, %v528
        %v533 = vsel %vm531, %v528, %v530
        %536 = vst [vmem:[#allocation2 + $0x130] sm:$0xff] %v532
        %537 = vst [vmem:[#allocation2 + $0x138] sm:$0xff] %v533
        %v538 = vld [vmem:[%s152] sm:$0xff]
        %v539 = vld [vmem:[%s152 + $0x8] sm:$0xff]
        %v540 = vld [vmem:[%s152 + $0x10] sm:$0xff]
        %544 = vrot.lane.b32.xlu0 %v538, 48
        %v545 = vpop.permute.xlu0 %544
        %546 = vrot.lane.b32.xlu0 %v539, 48
        %v547 = vpop.permute.xlu0 %546
        %548 = vrot.lane.b32.xlu0 %v540, 48
        %v549 = vpop.permute.xlu0 %548
        %vm550 = vcmask 392192
        %v551 = vsel %vm550, %v545, %v547
        %v552 = vsel %vm550, %v547, %v549
        %555 = vst [vmem:[#allocation2 + $0x140] sm:$0xff] %v551
        %556 = vst [vmem:[#allocation2 + $0x148] sm:$0xff] %v552
        %v557 = vld [vmem:[%s152] sm:$0xff]
        %v558 = vld [vmem:[%s152 + $0x8] sm:$0xff]
        %v559 = vld [vmem:[%s152 + $0x10] sm:$0xff]
        %563 = vrot.lane.b32.xlu0 %v557, 47
        %v564 = vpop.permute.xlu0 %563
        %565 = vrot.lane.b32.xlu0 %v558, 47
        %v566 = vpop.permute.xlu0 %565
        %567 = vrot.lane.b32.xlu0 %v559, 47
        %v568 = vpop.permute.xlu0 %567
        %vm569 = vcmask 384000
        %v570 = vsel %vm569, %v564, %v566
        %v571 = vsel %vm569, %v566, %v568
        %574 = vst [vmem:[#allocation2 + $0x150] sm:$0xff] %v570
        %575 = vst [vmem:[#allocation2 + $0x158] sm:$0xff] %v571
        %v576 = vld [vmem:[%s152] sm:$0xff]
        %v577 = vld [vmem:[%s152 + $0x8] sm:$0xff]
        %v578 = vld [vmem:[%s152 + $0x10] sm:$0xff]
        %582 = vrot.lane.b32.xlu0 %v576, 46
        %v583 = vpop.permute.xlu0 %582
        %584 = vrot.lane.b32.xlu0 %v577, 46
        %v585 = vpop.permute.xlu0 %584
        %586 = vrot.lane.b32.xlu0 %v578, 46
        %v587 = vpop.permute.xlu0 %586
        %vm588 = vcmask 375808
        %v589 = vsel %vm588, %v583, %v585
        %v590 = vsel %vm588, %v585, %v587
        %593 = vst [vmem:[#allocation2 + $0x160] sm:$0xff] %v589
        %594 = vst [vmem:[#allocation2 + $0x168] sm:$0xff] %v590
        %v595 = vld [vmem:[%s152] sm:$0xff]
        %v596 = vld [vmem:[%s152 + $0x8] sm:$0xff]
        %v597 = vld [vmem:[%s152 + $0x10] sm:$0xff]
        %601 = vrot.lane.b32.xlu0 %v595, 45
        %v602 = vpop.permute.xlu0 %601
        %603 = vrot.lane.b32.xlu0 %v596, 45
        %v604 = vpop.permute.xlu0 %603
        %605 = vrot.lane.b32.xlu0 %v597, 45
        %v606 = vpop.permute.xlu0 %605
        %vm607 = vcmask 367616
        %v608 = vsel %vm607, %v602, %v604
        %v609 = vsel %vm607, %v604, %v606
        %612 = vst [vmem:[#allocation2 + $0x170] sm:$0xff] %v608
        %613 = vst [vmem:[#allocation2 + $0x178] sm:$0xff] %v609
        %v614 = vld [vmem:[%s152] sm:$0xff]
        %v615 = vld [vmem:[%s152 + $0x8] sm:$0xff]
        %v616 = vld [vmem:[%s152 + $0x10] sm:$0xff]
        %620 = vrot.lane.b32.xlu0 %v614, 44
        %v621 = vpop.permute.xlu0 %620
        %622 = vrot.lane.b32.xlu0 %v615, 44
        %v623 = vpop.permute.xlu0 %622
        %624 = vrot.lane.b32.xlu0 %v616, 44
        %v625 = vpop.permute.xlu0 %624
        %vm626 = vcmask 359424
        %v627 = vsel %vm626, %v621, %v623
        %v628 = vsel %vm626, %v623, %v625
        %631 = vst [vmem:[#allocation2 + $0x180] sm:$0xff] %v627
        %632 = vst [vmem:[#allocation2 + $0x188] sm:$0xff] %v628
        %v633 = vlaneseq
        %v634 = vshrl.u32 %v633, 7
        %vm635 = vcmp.eq.s32.totalorder %v634, 0
        %v636 = vsel %vm635, 1.0, 0.0
        %637 = vst [vmem:[#allocation2 + $0x190] sm:$0xff] %v636
        %638 = vst [vmem:[#allocation2 + $0x198] sm:$0xff] %v636
        %639 = vst [vmem:[#allocation2 + $0x1a0] sm:$0xff] 0.0
        %640 = vst [vmem:[#allocation2 + $0x1a8] sm:$0xff] 0.0
        %641 = vst [vmem:[#allocation2 + $0x1b0] sm:$0xff] 0.0
        %642 = vst [vmem:[#allocation2 + $0x1b8] sm:$0xff] 0.0
        %643 = vst [vmem:[#allocation2 + $0x1c0] sm:$0xff] 0.0
        %644 = vst [vmem:[#allocation2 + $0x1c8] sm:$0xff] 0.0
        %645 = vst [vmem:[#allocation2 + $0x1d0] sm:$0xff] 0.0
        %646 = vst [vmem:[#allocation2 + $0x1d8] sm:$0xff] 0.0
        %647 = vst [vmem:[#allocation2 + $0x1e0] sm:$0xff] 0.0
        %648 = vst [vmem:[#allocation2 + $0x1e8] sm:$0xff] 0.0
        %649 = vst [vmem:[#allocation2 + $0x1f0] sm:$0xff] 0.0
        %650 = vst [vmem:[#allocation2 + $0x1f8] sm:$0xff] 0.0
        %v651 = vld [vmem:[#allocation3] sm:$0xff]
        %v652 = vld [vmem:[#allocation3 + $0x8] sm:$0xff]
        %v653 = vld [vmem:[#allocation2] sm:$0xff]
        %v654 = vld [vmem:[#allocation2 + $0x8] sm:$0xff]
        %v655 = vld [vmem:[#allocation2 + $0x10] sm:$0xff]
        %v656 = vld [vmem:[#allocation2 + $0x18] sm:$0xff]
        %v657 = vld [vmem:[#allocation2 + $0x20] sm:$0xff]
        %v658 = vld [vmem:[#allocation2 + $0x28] sm:$0xff]
        %v659 = vld [vmem:[#allocation2 + $0x30] sm:$0xff]
        %v660 = vld [vmem:[#allocation2 + $0x38] sm:$0xff]
        %v661 = vld [vmem:[#allocation2 + $0x40] sm:$0xff]
        %v662 = vld [vmem:[#allocation2 + $0x48] sm:$0xff]
        %v663 = vld [vmem:[#allocation2 + $0x50] sm:$0xff]
        %v664 = vld [vmem:[#allocation2 + $0x58] sm:$0xff]
        %v665 = vld [vmem:[#allocation2 + $0x60] sm:$0xff]
        %v666 = vld [vmem:[#allocation2 + $0x68] sm:$0xff]
        %v667 = vld [vmem:[#allocation2 + $0x70] sm:$0xff]
        %v668 = vld [vmem:[#allocation2 + $0x78] sm:$0xff]
        %v669 = vld [vmem:[#allocation2 + $0x80] sm:$0xff]
        %v670 = vld [vmem:[#allocation2 + $0x88] sm:$0xff]
        %v671 = vld [vmem:[#allocation2 + $0x90] sm:$0xff]
        %v672 = vld [vmem:[#allocation2 + $0x98] sm:$0xff]
        %v673 = vld [vmem:[#allocation2 + $0xa0] sm:$0xff]
        %v674 = vld [vmem:[#allocation2 + $0xa8] sm:$0xff]
        %v675 = vld [vmem:[#allocation2 + $0xb0] sm:$0xff]
        %v676 = vld [vmem:[#allocation2 + $0xb8] sm:$0xff]
        %v677 = vld [vmem:[#allocation2 + $0xc0] sm:$0xff]
        %v678 = vld [vmem:[#allocation2 + $0xc8] sm:$0xff]
        %v679 = vld [vmem:[#allocation2 + $0xd0] sm:$0xff]
        %v680 = vld [vmem:[#allocation2 + $0xd8] sm:$0xff]
        %v681 = vld [vmem:[#allocation2 + $0xe0] sm:$0xff]
        %v682 = vld [vmem:[#allocation2 + $0xe8] sm:$0xff]
        %v683 = vld [vmem:[#allocation2 + $0xf0] sm:$0xff]
        %v684 = vld [vmem:[#allocation2 + $0xf8] sm:$0xff]
        %v685 = vld [vmem:[#allocation2 + $0x100] sm:$0xff]
        %v686 = vld [vmem:[#allocation2 + $0x108] sm:$0xff]
        %v687 = vld [vmem:[#allocation2 + $0x110] sm:$0xff]
        %v688 = vld [vmem:[#allocation2 + $0x118] sm:$0xff]
        %v689 = vld [vmem:[#allocation2 + $0x120] sm:$0xff]
        %v690 = vld [vmem:[#allocation2 + $0x128] sm:$0xff]
        %v691 = vld [vmem:[#allocation2 + $0x130] sm:$0xff]
        %v692 = vld [vmem:[#allocation2 + $0x138] sm:$0xff]
        %v693 = vld [vmem:[#allocation2 + $0x140] sm:$0xff]
        %v694 = vld [vmem:[#allocation2 + $0x148] sm:$0xff]
        %v695 = vld [vmem:[#allocation2 + $0x150] sm:$0xff]
        %v696 = vld [vmem:[#allocation2 + $0x158] sm:$0xff]
        %v697 = vld [vmem:[#allocation2 + $0x160] sm:$0xff]
        %v698 = vld [vmem:[#allocation2 + $0x168] sm:$0xff]
        %v699 = vld [vmem:[#allocation2 + $0x170] sm:$0xff]
        %v700 = vld [vmem:[#allocation2 + $0x178] sm:$0xff]
        %v701 = vld [vmem:[#allocation2 + $0x180] sm:$0xff]
        %v702 = vld [vmem:[#allocation2 + $0x188] sm:$0xff]
        %v703 = vld [vmem:[#allocation2 + $0x190] sm:$0xff]
        %v704 = vld [vmem:[#allocation2 + $0x198] sm:$0xff]
        %v705 = vld [vmem:[#allocation2 + $0x1a0] sm:$0xff]
        %v706 = vld [vmem:[#allocation2 + $0x1a8] sm:$0xff]
        %v707 = vld [vmem:[#allocation2 + $0x1b0] sm:$0xff]
        %v708 = vld [vmem:[#allocation2 + $0x1b8] sm:$0xff]
        %v709 = vld [vmem:[#allocation2 + $0x1c0] sm:$0xff]
        %v710 = vld [vmem:[#allocation2 + $0x1c8] sm:$0xff]
        %v711 = vld [vmem:[#allocation2 + $0x1d0] sm:$0xff]
        %v712 = vld [vmem:[#allocation2 + $0x1d8] sm:$0xff]
        %v713 = vld [vmem:[#allocation2 + $0x1e0] sm:$0xff]
        %v714 = vld [vmem:[#allocation2 + $0x1e8] sm:$0xff]
        %v715 = vld [vmem:[#allocation2 + $0x1f0] sm:$0xff]
        %v716 = vld [vmem:[#allocation2 + $0x1f8] sm:$0xff]
        %717 = vmatprep.subr.mxu0 %v654
        %718 = vmatpush1.msra.mxu0 %v653
        %719 = vmatprep.subr.mxu0 %v656
        %720 = vmatpush1.msra.mxu0 %v655
        %721 = vmatprep.subr.mxu0 %v658
        %722 = vmatpush1.msra.mxu0 %v657
        %723 = vmatprep.subr.mxu0 %v660
        %724 = vmatpush1.msra.mxu0 %v659
        %725 = vmatprep.subr.mxu0 %v662
        %726 = vmatpush1.msra.mxu0 %v661
        %727 = vmatprep.subr.mxu0 %v664
        %728 = vmatpush1.msra.mxu0 %v663
        %729 = vmatprep.subr.mxu0 %v666
        %730 = vmatpush1.msra.mxu0 %v665
        %731 = vmatprep.subr.mxu0 %v668
        %732 = vmatpush1.msra.mxu0 %v667
        %733 = vmatprep.subr.mxu0 %v670
        %734 = vmatpush1.msra.mxu0 %v669
        %735 = vmatprep.subr.mxu0 %v672
        %736 = vmatpush1.msra.mxu0 %v671
        %737 = vmatprep.subr.mxu0 %v674
        %738 = vmatpush1.msra.mxu0 %v673
        %739 = vmatprep.subr.mxu0 %v676
        %740 = vmatpush1.msra.mxu0 %v675
        %741 = vmatprep.subr.mxu0 %v678
        %742 = vmatpush1.msra.mxu0 %v677
        %743 = vmatprep.subr.mxu0 %v680
        %744 = vmatpush1.msra.mxu0 %v679
        %745 = vmatprep.subr.mxu0 %v682
        %746 = vmatpush1.msra.mxu0 %v681
        %747 = vmatprep.subr.mxu0 %v684
        %748 = vmatpush1.msra.mxu0 %v683
        %749 = vmatprep.subr.mxu0 %v686
        %750 = vmatpush1.msra.mxu0 %v685
        %751 = vmatprep.subr.mxu0 %v688
        %752 = vmatpush1.msra.mxu0 %v687
        %753 = vmatprep.subr.mxu0 %v690
        %754 = vmatpush1.msra.mxu0 %v689
        %755 = vmatprep.subr.mxu0 %v692
        %756 = vmatpush1.msra.mxu0 %v691
        %757 = vmatprep.subr.mxu0 %v694
        %758 = vmatpush1.msra.mxu0 %v693
        %759 = vmatprep.subr.mxu0 %v696
        %760 = vmatpush1.msra.mxu0 %v695
        %761 = vmatprep.subr.mxu0 %v698
        %762 = vmatpush1.msra.mxu0 %v697
        %763 = vmatprep.subr.mxu0 %v700
        %764 = vmatpush1.msra.mxu0 %v699
        %765 = vmatprep.subr.mxu0 %v702
        %766 = vmatpush1.msra.mxu0 %v701
        %767 = vmatprep.subr.mxu0 %v704
        %768 = vmatpush1.msra.mxu0 %v703
        %769 = vmatprep.subr.mxu0 %v706
        %770 = vmatpush1.msra.mxu0 %v705
        %771 = vmatprep.subr.mxu0 %v708
        %772 = vmatpush1.msra.mxu0 %v707
        %773 = vmatprep.subr.mxu0 %v710
        %774 = vmatpush1.msra.mxu0 %v709
        %775 = vmatprep.subr.mxu0 %v712
        %776 = vmatpush1.msra.mxu0 %v711
        %777 = vmatprep.subr.mxu0 %v714
        %778 = vmatpush1.msra.mxu0 %v713
        %779 = vmatprep.subr.mxu0 %v716
        %780 = vmatpush1.msra.mxu0 %v715
        %781 = vmatprep.mubr.f32.mxu0 %v652
        %782 = vmatmul.mubr.f32.gmra.mrb[0].mxu0 %v651
        %v783 = vpop.f32.mrb[0].mxu0
        %v784 = vadd.f32 0.0, %v783
        %v785 = vpop.f32.mrb[0].mxu0
        %v786 = vadd.f32 0.0, %v785
        %787 = vdwg.mxu0
        %v788 = vmul.f32 %v784, %v784
        %v789 = vmul.f32 %v786, %v786
        %v790 = vmul.f32 %v788, 0.044715
        %v791 = vmul.f32 %v789, 0.044715
        %v792 = vadd.f32 %v790, 1.0
        %v793 = vadd.f32 %v791, 1.0
        %v794 = vmul.f32 %v784, %v792
        %v795 = vmul.f32 %v786, %v793
        %v796 = vmul.f32 %v794, 0.7978846
        %v797 = vmul.f32 %v795, 0.7978846
        %v798 = vtanh.pop %v796
        %v799 = vtanh.pop %v797
        %v800 = vmul.f32 %v784, 0.5
        %v801 = vmul.f32 %v786, 0.5
        %v802 = vadd.f32 %v798, 1.0
        %v803 = vadd.f32 %v799, 1.0
        %v804 = vmul.f32 %v800, %v802
        %v805 = vmul.f32 %v801, %v803
        %806 = vst [vmem:[%s172] sm:$0xff] %v804
        %807 = vst [vmem:[%s172 + $0x8] sm:$0xff] %v805
        %s808 = sand.u32 %s75, 1
        %s809 = scalar_lea.sflag [#allocation5], %s808
        %s810 = sand.u32 %s75, 1
        %s811 = smul.addr %s810, 16
        %s812 = scalar_lea.vmem [#allocation8], %s811
        // Predicated region
        $region37: #{tpu_custom_call.1} parent=27 // pred_check
          %p813 = pneg %p85
        $region38: #{tpu_custom_call.1} parent=27 // pred_check_branch
          %815 = sbr.rel (%p813) target = $region40
        $region39: #{tpu_custom_call.1} parent=27 // pred_region
          %s817 = ssub.s32 256, 256
          %818 = vsyncadd %s809, %s817
          %s819 = smul.addr %s20, 2
          %s820 = smul.addr %s819, 128
          %s821 = scalar_lea.hbm %s2, %s820
          %s823 = sshll.u32 %s812, 4
          %s824 = int_to_ptr.vmem [resolvable:$true] %s823
          %826 = dma.vmem_to_hbm [thread:$0]  %s824, 256, %s821, %s809
        $region40: #{tpu_custom_call.1} parent=27 // pred_fallthru
          _
      $region28: #{tpu_custom_call.1} parent=5 // pred_fallthru
        _
      %p827 = scmp.le.s32.totalorder 2, %s15
      // Predicated region
      $region41: #{tpu_custom_call.1} parent=5 // pred_check
        %p828 = pneg %p827
      $region42: #{tpu_custom_call.1} parent=5 // pred_check_branch
        %830 = sbr.rel (%p828) target = $region44
      $region43: #{tpu_custom_call.1} parent=5 // pred_region
        %s831 = ssub.s32 %s15, 2
        // Predicated region
        $region45: #{tpu_custom_call.1} parent=43 // pred_check
          %p832 = pneg %p91
        $region46: #{tpu_custom_call.1} parent=43 // pred_check_branch
          %834 = sbr.rel (%p832) target = $region48
        $region47: #{tpu_custom_call.1} parent=43 // pred_region
          %s835 = sand.u32 %s76, 1
          %s836 = scalar_lea.sflag [#allocation5], %s835
          %s837 = sand.u32 %s76, 1
          %s838 = smul.addr %s837, 16
          %s839 = scalar_lea.vmem [#allocation8], %s838
          %840 = dma.done %s836, 256
        $region48: #{tpu_custom_call.1} parent=43 // pred_fallthru
          _
      $region44: #{tpu_custom_call.1} parent=5 // pred_fallthru
        _
    $region6: #{tpu_custom_call.1} parent=1 // loop_footer
      %s19 = sadd.s32 1, %s15
    $region7: #{tpu_custom_call.1} parent=1 // loop_footer_branch
      %14 = sbr.rel target = $region3
    $region8: #{tpu_custom_call.1} parent=1 // loop_exit
      _
    %841 = vsyncpa [#allocation4], 1
    %s842 = scalar_lea.sflag [#allocation4], 1
    %843 = vsyncpa %s842, 1
    %844 = vsyncpa [#allocation7], 1
    %s845 = scalar_lea.sflag [#allocation7], 1
    %846 = vsyncpa %s845, 1
    %847 = vsyncpa [#allocation5], 1
    %s848 = scalar_lea.sflag [#allocation5], 1
    %849 = vsyncpa %s848, 1

</llo_original>
